<compile_context>
chip_gen: v7x
topology: tpu7x:2x2x1
jax: 0.10.0
libtpu: 0.0.40
codegen_flags: <defaults>
</compile_context>

<pallas_src>
import functools

import jax
import jax.numpy as jnp
import numpy as np
from jax.experimental import pallas as pl
from jax.experimental.pallas import tpu as pltpu

_IGNORE = -100


def _round_up(a: int, b: int) -> int:
    return (a + b - 1) // b * b


# ---------------------------------------------------------------------------
# Kernel 1: masked cross-entropy with label smoothing (per-tile partial sums)
# ---------------------------------------------------------------------------
def _masked_ce_ls_kernel(logits_ref, labels_ref, partial_ref, *,
                         label_smoothing: float, n_rows: int):
    i = pl.program_id(0)

    x = logits_ref[...].astype(jnp.float32)          # (TN, C)  upcast in-kernel
    t = labels_ref[...]                              # (TN, 1) int32
    tn, c = x.shape

    # Row validity: in-bounds (ragged last tile) AND not the ignore index.
    row_ids = i * tn + jax.lax.broadcasted_iota(jnp.int32, (tn, 1), 0)
    valid = (row_ids < n_rows) & (t != _IGNORE)      # (TN, 1) bool

    # Fused label-smoothed CE: ce = lse - (1-ls)*x_t - (ls/C)*sum_x
    m = jnp.max(x, axis=-1, keepdims=True)
    lse = m + jnp.log(jnp.sum(jnp.exp(x - m), axis=-1, keepdims=True))
    classes = jax.lax.broadcasted_iota(jnp.int32, (tn, c), 1)
    onehot = (classes == t).astype(jnp.float32)      # all-zero row if t == -100
    x_t = jnp.sum(onehot * x, axis=-1, keepdims=True)
    sum_x = jnp.sum(x, axis=-1, keepdims=True)
    ce = lse - (1.0 - label_smoothing) * x_t - (label_smoothing / c) * sum_x

    ce = jnp.where(valid, ce, 0.0)                   # also kills NaN from padding
    loss_sum = jnp.sum(ce)
    count = jnp.sum(valid.astype(jnp.float32))

    # Lane-dense (1, 128) partial row: lane 0 = sum, lane 1 = count.
    lane = jax.lax.broadcasted_iota(jnp.int32, (1, 128), 1)
    partial_ref[...] = jnp.where(lane == 0, loss_sum,
                                 jnp.where(lane == 1, count, 0.0))


def masked_ce_ls_mean(logits, labels, *, label_smoothing: float = 0.1,
                      max_block_n: int = 2048):
    """mean of CrossEntropy(label_smoothing) over labels != -100 (0 if none)."""
    C = logits.shape[-1]
    logits2d = logits.reshape(-1, C)                 # native dtype, no upcast
    N = logits2d.shape[0]
    labels2d = labels.reshape(N, 1).astype(jnp.int32)

    # VMEM-aware tile: keep 2 double-buffered (bn, C) input copies well under
    # the scoped VMEM limit on every generation (v7x has only 64 MiB physical).
    itemsize = jnp.dtype(logits2d.dtype).itemsize
    budget = 8 * 1024 * 1024
    bn = min(max_block_n, max(8, budget // max(1, 2 * C * itemsize)))
    bn = max(8, (bn // 8) * 8)
    bn = min(bn, _round_up(N, 8))
    G = pl.cdiv(N, bn)

    kernel = functools.partial(_masked_ce_ls_kernel,
                               label_smoothing=float(label_smoothing),
                               n_rows=N)

    partials = pl.pallas_call(
        kernel,
        out_shape=jax.ShapeDtypeStruct((G, 128), jnp.float32),
        grid_spec=pltpu.PrefetchScalarGridSpec(
            num_scalar_prefetch=0,
            grid=(G,),
            in_specs=[
                pl.BlockSpec((bn, C), lambda i: (i, 0)),   # logits tile
                pl.BlockSpec((bn, 1), lambda i: (i, 0)),   # labels tile
            ],
            out_specs=pl.BlockSpec((1, 128), lambda i: (i, 0)),
        ),
        compiler_params=pltpu.CompilerParams(
            dimension_semantics=("parallel",)),            # no carried state
    )(logits2d, labels2d)

    s = jnp.sum(partials[:, 0])
    c = jnp.sum(partials[:, 1])
    return jnp.where(c > 0, s / jnp.maximum(c, 1.0), jnp.float32(0.0))


# ---------------------------------------------------------------------------
# Kernel 2: masked element-wise loss (BCE-with-logits or MSE), partial sums
# ---------------------------------------------------------------------------
def _masked_elemwise_kernel(scores_ref, labels_ref, partial_ref, *, mode: str):
    x = scores_ref[...].astype(jnp.float32)
    y = labels_ref[...]                              # f32, padding == -100.0
    valid = (y != float(_IGNORE))
    yv = jnp.where(valid, y, 0.0)

    if mode == "bce":
        # Stable BCEWithLogits: max(x,0) - x*y + log(1 + exp(-|x|))
        loss = jnp.maximum(x, 0.0) - x * yv + jnp.log(1.0 + jnp.exp(-jnp.abs(x)))
    else:  # "mse"
        d = x - yv
        loss = d * d

    loss = jnp.where(valid, loss, 0.0)
    loss_sum = jnp.sum(loss)
    count = jnp.sum(valid.astype(jnp.float32))

    lane = jax.lax.broadcasted_iota(jnp.int32, (1, 128), 1)
    partial_ref[...] = jnp.where(lane == 0, loss_sum,
                                 jnp.where(lane == 1, count, 0.0))


def _masked_elemwise_mean(scores, labels, mode: str, *, max_block_r: int = 512):
    """mean of element-wise loss over labels != -100 (0 if none)."""
    x = scores.reshape(-1)
    y = labels.reshape(-1).astype(jnp.float32)
    n = x.shape[0]

    lanes = 128
    rows = pl.cdiv(n, lanes)
    br = min(max_block_r, _round_up(rows, 8))
    br = max(8, (br // 8) * 8)
    R = _round_up(rows, br)                  # pad to whole blocks; padded labels
    pad = R * lanes - n                      # carry the ignore value -100.0
    x = jnp.pad(x, (0, pad)).reshape(R, lanes)
    y = jnp.pad(y, (0, pad), constant_values=float(_IGNORE)).reshape(R, lanes)
    G = R // br

    partials = pl.pallas_call(
        functools.partial(_masked_elemwise_kernel, mode=mode),
        out_shape=jax.ShapeDtypeStruct((G, 128), jnp.float32),
        grid_spec=pltpu.PrefetchScalarGridSpec(
            num_scalar_prefetch=0,
            grid=(G,),
            in_specs=[
                pl.BlockSpec((br, lanes), lambda i: (i, 0)),
                pl.BlockSpec((br, lanes), lambda i: (i, 0)),
            ],
            out_specs=pl.BlockSpec((1, 128), lambda i: (i, 0)),
        ),
        compiler_params=pltpu.CompilerParams(
            dimension_semantics=("parallel",)),
    )(x, y)

    s = jnp.sum(partials[:, 0])
    c = jnp.sum(partials[:, 1])
    return jnp.where(c > 0, s / jnp.maximum(c, 1.0), jnp.float32(0.0))


def masked_bce_mean(scores, labels):
    return _masked_elemwise_mean(scores, labels, "bce")


def masked_mse_mean(scores, labels):
    return _masked_elemwise_mean(scores, labels, "mse")


# ---------------------------------------------------------------------------
# Module forward: ImplicitDetectionLoss
# ---------------------------------------------------------------------------
def implicit_detection_loss(outputs, targets, *,
                            implicit_aspect_weight=1.0,
                            implicit_opinion_weight=1.0,
                            combination_weight=0.5,
                            grid_tagging_weight=0.8,
                            confidence_weight=0.3):
    losses = {}
    total = jnp.float32(0.0)

    if 'implicit_aspect_scores' in outputs and 'implicit_aspect_labels' in targets:
        l = masked_bce_mean(outputs['implicit_aspect_scores'],
                            targets['implicit_aspect_labels'])
        losses['implicit_aspect_loss'] = l
        total = total + implicit_aspect_weight * l

    if 'implicit_opinion_scores' in outputs and 'implicit_opinion_labels' in targets:
        l = masked_bce_mean(outputs['implicit_opinion_scores'],
                            targets['implicit_opinion_labels'])
        losses['implicit_opinion_loss'] = l
        total = total + implicit_opinion_weight * l

    if 'aspect_sentiment_combinations' in outputs and 'sentiment_combination_labels' in targets:
        l = masked_ce_ls_mean(outputs['aspect_sentiment_combinations'],
                              targets['sentiment_combination_labels'],
                              label_smoothing=0.1)
        losses['sentiment_combination_loss'] = l
        total = total + combination_weight * l

    if 'aspect_grid_logits' in outputs and 'grid_labels' in targets:
        g = outputs['aspect_grid_logits']
        B, S, C1, C2 = g.shape
        l = masked_ce_ls_mean(g.reshape(B, S, C1 * C2),
                              targets['grid_labels'],
                              label_smoothing=0.1)
        losses['grid_tagging_loss'] = l
        total = total + grid_tagging_weight * l

    if 'combination_logits' in outputs and 'combination_labels' in targets:
        l = masked_ce_ls_mean(outputs['combination_logits'],
                              targets['combination_labels'],
                              label_smoothing=0.1)
        losses['combination_classification_loss'] = l
        total = total + combination_weight * l

    if 'confidence_scores' in outputs and 'confidence_labels' in targets:
        l = masked_mse_mean(outputs['confidence_scores'],
                            targets['confidence_labels'])
        losses['confidence_loss'] = l
        total = total + confidence_weight * l

    losses['total_implicit_loss'] = total
    return losses


# ---------------------------------------------------------------------------
# Pure-JAX reference mirroring the PyTorch module (for validation only)
# ---------------------------------------------------------------------------
def _ref_bce(scores, labels):
    mask = labels != _IGNORE
    x = scores.astype(jnp.float32)
    y = jnp.where(mask, labels.astype(jnp.float32), 0.0)
    loss = jnp.maximum(x, 0.0) - x * y + jnp.log(1.0 + jnp.exp(-jnp.abs(x)))
    s = jnp.sum(jnp.where(mask, loss, 0.0))
    c = jnp.sum(mask.astype(jnp.float32))
    return jnp.where(c > 0, s / jnp.maximum(c, 1.0), 0.0)


def _ref_mse(scores, labels):
    mask = labels != float(_IGNORE)
    d = scores.astype(jnp.float32) - jnp.where(mask, labels.astype(jnp.float32), 0.0)
    loss = d * d
    s = jnp.sum(jnp.where(mask, loss, 0.0))
    c = jnp.sum(mask.astype(jnp.float32))
    return jnp.where(c > 0, s / jnp.maximum(c, 1.0), 0.0)


def _ref_ce_ls(logits, labels, ls=0.1):
    C = logits.shape[-1]
    x = logits.reshape(-1, C).astype(jnp.float32)
    t = labels.reshape(-1)
    mask = t != _IGNORE
    lp = jax.nn.log_softmax(x, axis=-1)
    oh = jax.nn.one_hot(jnp.where(mask, t, 0), C, dtype=jnp.float32)
    q = (1.0 - ls) * oh + ls / C
    ce = -jnp.sum(q * lp, axis=-1)
    s = jnp.sum(jnp.where(mask, ce, 0.0))
    c = jnp.sum(mask.astype(jnp.float32))
    return jnp.where(c > 0, s / jnp.maximum(c, 1.0), 0.0)


def _reference_losses(outputs, targets):
    ref = {}
    total = jnp.float32(0.0)
    ref['implicit_aspect_loss'] = _ref_bce(outputs['implicit_aspect_scores'],
                                           targets['implicit_aspect_labels'])
    total += 1.0 * ref['implicit_aspect_loss']
    ref['implicit_opinion_loss'] = _ref_bce(outputs['implicit_opinion_scores'],
                                            targets['implicit_opinion_labels'])
    total += 1.0 * ref['implicit_opinion_loss']
    ref['sentiment_combination_loss'] = _ref_ce_ls(
        outputs['aspect_sentiment_combinations'],
        targets['sentiment_combination_labels'])
    total += 0.5 * ref['sentiment_combination_loss']
    g = outputs['aspect_grid_logits']
    B, S, C1, C2 = g.shape
    ref['grid_tagging_loss'] = _ref_ce_ls(g.reshape(B, S, C1 * C2),
                                          targets['grid_labels'])
    total += 0.8 * ref['grid_tagging_loss']
    ref['combination_classification_loss'] = _ref_ce_ls(
        outputs['combination_logits'], targets['combination_labels'])
    total += 0.5 * ref['combination_classification_loss']
    ref['confidence_loss'] = _ref_mse(outputs['confidence_scores'],
                                      targets['confidence_labels'])
    total += 0.3 * ref['confidence_loss']
    ref['total_implicit_loss'] = total
    return ref


if __name__ == "__main__":
    key = jax.random.PRNGKey(0)
    ks = jax.random.split(key, 12)

    B, S = 2, 8
    C_comb, C1, C2, C_cls = 5, 3, 3, 4

    outputs = {
        'implicit_aspect_scores': jax.random.normal(ks[0], (B, S), jnp.float32),
        'implicit_opinion_scores': jax.random.normal(ks[1], (B, S), jnp.float32),
        # native bf16 logits go straight into the kernel (no wrapper upcast)
        'aspect_sentiment_combinations':
            jax.random.normal(ks[2], (B, S, C_comb), jnp.float32).astype(jnp.bfloat16),
        'aspect_grid_logits': jax.random.normal(ks[3], (B, S, C1, C2), jnp.float32),
        'combination_logits': jax.random.normal(ks[4], (B, S, C_cls), jnp.float32),
        'confidence_scores': jax.random.uniform(ks[5], (B, S), jnp.float32),
    }

    targets = {
        'implicit_aspect_labels':
            jax.random.randint(ks[6], (B, S), 0, 2, jnp.int32).at[0, 0].set(_IGNORE),
        'implicit_opinion_labels':
            jax.random.randint(ks[7], (B, S), 0, 2, jnp.int32).at[1, 3].set(_IGNORE),
        'sentiment_combination_labels':
            jax.random.randint(ks[8], (B, S), 0, C_comb, jnp.int32).at[0, 5].set(_IGNORE),
        'grid_labels':
            jax.random.randint(ks[9], (B, S), 0, C1 * C2, jnp.int32).at[1, 7].set(_IGNORE),
        'combination_labels':
            jax.random.randint(ks[10], (B, S), 0, C_cls, jnp.int32).at[0, 2].set(_IGNORE),
        'confidence_labels':
            jax.random.uniform(ks[11], (B, S), jnp.float32).at[1, 0].set(float(_IGNORE)),
    }

    losses = implicit_detection_loss(outputs, targets)
    losses = jax.block_until_ready(losses)

    ref = _reference_losses(outputs, targets)
    for k in ref:
        np.testing.assert_allclose(np.asarray(losses[k]), np.asarray(ref[k]),
                                   rtol=2e-5, atol=2e-5)

    print("KERNEL_OK")
</pallas_src>

<mosaic_0001>
module attributes {stable_mosaic.version = 11 : i64} {
  func.func @_masked_elemwise_kernel(%arg0: i32, %arg1: memref<8x128xf32, #tpu.memory_space<vmem>>, %arg2: memref<8x128xf32, #tpu.memory_space<vmem>>, %arg3: memref<1x128xf32, #tpu.memory_space<vmem>>) attributes {dimension_semantics = [#tpu.dimension_semantics<parallel>], iteration_bounds = array<i64: 1>, scalar_prefetch = 0 : i64, scratch_operands = 0 : i64, tpu.core_type = #tpu.core_type<tc>, window_params = [{transform_indices = @transform_0, window_bounds = array<i64: 8, 128>}, {transform_indices = @transform_1, window_bounds = array<i64: 8, 128>}, {transform_indices = @transform_2, window_bounds = array<i64: 1, 128>}]} {
    %c0 = arith.constant 0 : index
    %c0_0 = arith.constant 0 : index
    %0 = vector.load %arg1[%c0, %c0_0] : memref<8x128xf32, #tpu.memory_space<vmem>>, vector<8x128xf32>
    %c0_1 = arith.constant 0 : index
    %c0_2 = arith.constant 0 : index
    %1 = vector.load %arg2[%c0_1, %c0_2] : memref<8x128xf32, #tpu.memory_space<vmem>>, vector<8x128xf32>
    %cst = arith.constant -1.000000e+02 : f32
    %2 = vector.broadcast %cst : f32 to vector<8x128xf32>
    %3 = arith.cmpf one, %1, %2 : vector<8x128xf32>
    %cst_3 = arith.constant 0.000000e+00 : f32
    %4 = vector.broadcast %cst_3 : f32 to vector<8x128xf32>
    %5 = arith.select %3, %1, %4 : vector<8x128xi1>, vector<8x128xf32>
    %cst_4 = arith.constant 0.000000e+00 : f32
    %6 = vector.broadcast %cst_4 : f32 to vector<8x128xf32>
    %7 = arith.maximumf %0, %6 : vector<8x128xf32>
    %8 = arith.mulf %0, %5 : vector<8x128xf32>
    %9 = arith.subf %7, %8 : vector<8x128xf32>
    %10 = math.absf %0 : vector<8x128xf32>
    %cst_5 = arith.constant 0.000000e+00 : f32
    %11 = vector.broadcast %cst_5 : f32 to vector<8x128xf32>
    %12 = arith.subf %11, %10 : vector<8x128xf32>
    %13 = math.exp %12 : vector<8x128xf32>
    %cst_6 = arith.constant 1.000000e+00 : f32
    %14 = vector.broadcast %cst_6 : f32 to vector<8x128xf32>
    %15 = arith.addf %14, %13 : vector<8x128xf32>
    %16 = math.log %15 : vector<8x128xf32>
    %17 = arith.addf %9, %16 : vector<8x128xf32>
    %cst_7 = arith.constant 0.000000e+00 : f32
    %18 = vector.broadcast %cst_7 : f32 to vector<8x128xf32>
    %19 = arith.select %3, %17, %18 : vector<8x128xi1>, vector<8x128xf32>
    %20 = vector.shape_cast %19 : vector<8x128xf32> to vector<1x8x128xf32>
    %cst_8 = arith.constant dense<0.000000e+00> : vector<1xf32>
    %21 = vector.multi_reduction <add>, %20, %cst_8 [1, 2] : vector<1x8x128xf32> to vector<1xf32>
    %22 = vector.shape_cast %21 : vector<1xf32> to vector<1x1x1xf32>
    %23 = vector.extract %22[0, 0, 0] : f32 from vector<1x1x1xf32>
    %24 = arith.extui %3 : vector<8x128xi1> to vector<8x128xi32>
    %25 = arith.sitofp %24 : vector<8x128xi32> to vector<8x128xf32>
    %26 = vector.shape_cast %25 : vector<8x128xf32> to vector<1x8x128xf32>
    %cst_9 = arith.constant dense<0.000000e+00> : vector<1xf32>
    %27 = vector.multi_reduction <add>, %26, %cst_9 [1, 2] : vector<1x8x128xf32> to vector<1xf32>
    %28 = vector.shape_cast %27 : vector<1xf32> to vector<1x1x1xf32>
    %29 = vector.extract %28[0, 0, 0] : f32 from vector<1x1x1xf32>
    %30 = tpu.iota {dimensions = array<i32: 1>} : vector<1x128xi32>
    %c0_i32 = arith.constant 0 : i32
    %31 = vector.broadcast %c0_i32 : i32 to vector<1x128xi32>
    %32 = arith.cmpi eq, %30, %31 : vector<1x128xi32>
    %c1_i32 = arith.constant 1 : i32
    %33 = vector.broadcast %c1_i32 : i32 to vector<1x128xi32>
    %34 = arith.cmpi eq, %30, %33 : vector<1x128xi32>
    %cst_10 = arith.constant 0.000000e+00 : f32
    %35 = vector.broadcast %29 : f32 to vector<1x128xf32>
    %36 = vector.broadcast %cst_10 : f32 to vector<1x128xf32>
    %37 = arith.select %34, %35, %36 : vector<1x128xi1>, vector<1x128xf32>
    %38 = vector.broadcast %23 : f32 to vector<1x128xf32>
    %39 = arith.select %32, %38, %37 : vector<1x128xi1>, vector<1x128xf32>
    %c0_11 = arith.constant 0 : index
    %c0_12 = arith.constant 0 : index
    %40 = vector.load %arg3[%c0_11, %c0_12] : memref<1x128xf32, #tpu.memory_space<vmem>>, vector<1x128xf32>
    tpu.vector_store %arg3[%c0_11, %c0_12], %39 {strides = array<i32>} : memref<1x128xf32, #tpu.memory_space<vmem>>, vector<1x128xf32>,
    return
  }
  func.func @transform_0(%arg0: i32) -> (i32, i32) {
    %c0_i32 = arith.constant 0 : i32
    %c0_i32_0 = arith.constant 0 : i32
    return %arg0, %c0_i32 : i32, i32
  }
  func.func @transform_1(%arg0: i32) -> (i32, i32) {
    %c0_i32 = arith.constant 0 : i32
    %c0_i32_0 = arith.constant 0 : i32
    return %arg0, %c0_i32 : i32, i32
  }
  func.func @transform_2(%arg0: i32) -> (i32, i32) {
    %c0_i32 = arith.constant 0 : i32
    %c0_i32_0 = arith.constant 0 : i32
    return %arg0, %c0_i32 : i32, i32
  }
}

</mosaic_0001>

<llo_original>
// kernel: tpu_custom_call.1
$region0: #{tpu_custom_call.1}
  #allocation0 [shape = 'u32[]', space=smem, size = 0x4, offset = 0x4, fixed_abs, tag = 'smem constant byte address 0x4 - core index']
  #allocation1 [shape = 'u32[144,128]{1,0:T(1,128)}', space=vmem, size = 0x12000, scoped, tag = 'internal scratch']
  %s0 = inlined_call_operand.hbm [shape: f32[8,128], index: 0, kind: input, shape index: {}]
  %s1 = inlined_call_operand.hbm [shape: f32[8,128], index: 1, kind: input, shape index: {}]
  %s2 = inlined_call_operand.hbm [shape: f32[1,128], index: 2, kind: output, shape index: {}]
  %s3 = sld [smem:[#allocation0]]
  $region26: #{tpu_custom_call.1} parent=0
    _
  %s5 = ssub.s32 1, %s3
  %s6 = scalar_select 0, %s5, %s3
  $region1: #{tpu_custom_call.1} parent=0
    #allocation2 [shape = 'u8[4096]{0}', space=vmem, size = 0x1000, scoped, tag = 'input window, operand 0, single buffered']
    #allocation3 [shape = 's32[1]{0}', space=sflag, size = 0x4, scoped, tag = 'scoped memory for tpu_custom_call.1']
    #allocation4 [shape = 's32[1]{0}', space=sflag, size = 0x4, scoped, tag = 'scoped memory for tpu_custom_call.1']
    #allocation5 [shape = 'u8[4096]{0}', space=vmem, size = 0x1000, scoped, tag = 'input window, operand 1, single buffered']
    #allocation6 [shape = 's32[1]{0}', space=sflag, size = 0x4, scoped, tag = 'scoped memory for tpu_custom_call.1']
    #allocation7 [shape = 'u8[512]{0}', space=vmem, size = 0x400, scoped, tag = 'output window, operand 0, single buffered']
    %7 = vsyncpa [#allocation3], 0
    %8 = vsyncpa [#allocation6], 0
    %9 = vsyncpa [#allocation4], 0
    // Predicated region
    $region2: #{tpu_custom_call.1} parent=1 // pred_check
      _
    $region3: #{tpu_custom_call.1} parent=1 // pred_check_branch
      %11 = sbr.rel (0) target = $region5
    $region4: #{tpu_custom_call.1} parent=1 // pred_region
      %s13 = ssub.s32 128, 128
      %14 = vsyncadd [#allocation3], %s13
      %s16 = sshll.u32 [#allocation2], 4
      %s17 = int_to_ptr.vmem [resolvable:$true] %s16
      %19 = dma.hbm_to_vmem [thread:$0]  %s0, 128, %s17, [#allocation3]
    $region5: #{tpu_custom_call.1} parent=1 // pred_fallthru
      _
    // Predicated region
    $region6: #{tpu_custom_call.1} parent=1 // pred_check
      _
    $region7: #{tpu_custom_call.1} parent=1 // pred_check_branch
      %21 = sbr.rel (0) target = $region9
    $region8: #{tpu_custom_call.1} parent=1 // pred_region
      %s23 = ssub.s32 128, 128
      %24 = vsyncadd [#allocation6], %s23
      %s26 = sshll.u32 [#allocation5], 4
      %s27 = int_to_ptr.vmem [resolvable:$true] %s26
      %29 = dma.hbm_to_vmem [thread:$0]  %s1, 128, %s27, [#allocation6]
    $region9: #{tpu_custom_call.1} parent=1 // pred_fallthru
      _
    // Predicated region
    $region10: #{tpu_custom_call.1} parent=1 // pred_check
      _
    $region11: #{tpu_custom_call.1} parent=1 // pred_check_branch
      %31 = sbr.rel (0) target = $region13
    $region12: #{tpu_custom_call.1} parent=1 // pred_region
      %32 = dma.done [#allocation3], 128
    $region13: #{tpu_custom_call.1} parent=1 // pred_fallthru
      _
    // Predicated region
    $region14: #{tpu_custom_call.1} parent=1 // pred_check
      _
    $region15: #{tpu_custom_call.1} parent=1 // pred_check_branch
      %34 = sbr.rel (0) target = $region17
    $region16: #{tpu_custom_call.1} parent=1 // pred_region
      %35 = dma.done [#allocation6], 128
    $region17: #{tpu_custom_call.1} parent=1 // pred_fallthru
      _
    %v36 = vld [vmem:[#allocation2] sm:$0xff]
    %v37 = vld [vmem:[#allocation5] sm:$0xff]
    %vm38 = vcmp.ne.f32.partialorder %v37, -100.0
    %v39 = vsel %vm38, %v37, 0.0
    %v40 = vmax.f32 %v36, 0.0
    %v41 = vmul.f32 %v36, %v39
    %v42 = vsub.f32 %v40, %v41
    %v43 = vand.u32 2147483647, %v36
    %v44 = vsub.f32 0.0, %v43
    %v45 = vmul.f32 %v44, 1.442695
    %v46 = vpow.pop %v45
    %v47 = vadd.f32 %v46, 1.0
    %v48 = vlog2.pop %v47
    %v49 = vmul.f32 %v48, 0.6931472
    %v50 = vadd.f32 %v42, %v49
    %v51 = vsel %vm38, %v50, 0.0
    %52 = vadd.xlane.f32.xlu0 %v51
    %v53 = vpop.xlane.xlu0 %52
    %v54 = vrot.slane %v53, 4
    %v55 = vadd.f32 %v53, %v54
    %v56 = vrot.slane %v55, 2
    %v57 = vadd.f32 %v55, %v56
    %v58 = vrot.slane %v57, 1
    %v59 = vadd.f32 %v57, %v58
    %s60 = vtos %v59
    %v61 = vsel %vm38, 1, 0
    %v62 = vcvt.s32.f32 %v61
    %63 = vadd.xlane.f32.xlu0 %v62
    %v64 = vpop.xlane.xlu0 %63
    %v65 = vrot.slane %v64, 4
    %v66 = vadd.f32 %v64, %v65
    %v67 = vrot.slane %v66, 2
    %v68 = vadd.f32 %v66, %v67
    %v69 = vrot.slane %v68, 1
    %v70 = vadd.f32 %v68, %v69
    %s71 = vtos %v70
    %v72 = vlaneseq
    %v73 = vand.u32 %v72, 127
    %vm74 = vcmp.eq.s32.totalorder %v73, 0
    %vm75 = vcmp.eq.s32.totalorder %v73, 1
    %v76 = vstv %s71
    %v77 = vsel %vm75, %v76, 0.0
    %v78 = vstv %s60
    %v79 = vsel %vm74, %v78, %v77
    %80 = vst [vmem:[#allocation7] sm:$0x1] %v79
    // Predicated region
    $region18: #{tpu_custom_call.1} parent=1 // pred_check
      _
    $region19: #{tpu_custom_call.1} parent=1 // pred_check_branch
      %82 = sbr.rel (0) target = $region21
    $region20: #{tpu_custom_call.1} parent=1 // pred_region
      %s84 = ssub.s32 16, 16
      %85 = vsyncadd [#allocation4], %s84
      %s87 = sshll.u32 [#allocation7], 4
      %s88 = int_to_ptr.vmem [resolvable:$true] %s87
      %90 = dma.vmem_to_hbm [thread:$0]  %s88, 16, %s2, [#allocation4]
    $region21: #{tpu_custom_call.1} parent=1 // pred_fallthru
      _
    // Predicated region
    $region22: #{tpu_custom_call.1} parent=1 // pred_check
      _
    $region23: #{tpu_custom_call.1} parent=1 // pred_check_branch
      %92 = sbr.rel (0) target = $region25
    $region24: #{tpu_custom_call.1} parent=1 // pred_region
      %93 = dma.done [#allocation4], 16
    $region25: #{tpu_custom_call.1} parent=1 // pred_fallthru
      _
    %94 = vsyncpa [#allocation3], 1
    %95 = vsyncpa [#allocation6], 1
    %96 = vsyncpa [#allocation4], 1

</llo_original>
